<compile_context>
chip_gen: v6e
topology: v6e:2x2x1
jax: 0.10.0
libtpu: 0.0.40
codegen_flags: <defaults>
</compile_context>

<pallas_src>
import jax
import jax.numpy as jnp
from jax import lax
from jax.experimental import pallas as pl
from jax.experimental.pallas import tpu as pltpu


def _round_up(x, m):
    return ((x + m - 1) // m) * m


def _pick_tn(H, budget_bytes, w_bytes, max_tn):
    """Output-column tile: largest 128-multiple divisor of H whose resident
    weight blocks (2 weights x bufs) fit half the VMEM budget (and <= max_tn)."""
    def resident_bytes(tn):
        bufs = 1 if tn == H else 2          # constant blocks are single-buffered
        return bufs * 2 * tn * H * w_bytes

    if H % 128 != 0:
        # Cannot split on a lane-aligned boundary; keep weights fully resident.
        # TODO(synk): support huge H that is not a multiple of 128 (pad once at init).
        return H
    q = H // 128
    cands = [H // b for b in range(1, q + 1)
             if q % b == 0 and (max_tn is None or H // b <= max_tn)]
    if not cands:
        return 128
    for tn in cands:                        # largest candidate first
        if resident_bytes(tn) <= budget_bytes // 2:
            return tn
    return cands[-1]


def _fuse_block(vf_mm, vt_mm, wf, wt, b, vf_blend, vt_blend, out_dtype):
    """z = Vf @ Wf^T + Vt @ Wt^T + b ; lam = sigmoid(z) ; Vf + lam*(Vt - Vf).

    Weights arrive in their native (out, in) layout; the transposed contraction
    (last dim of both operands) is fed to the MXU directly — no transpose pass.
    """
    dn = (((1,), (1,)), ((), ()))
    z = lax.dot_general(vf_mm, wf, dn, preferred_element_type=jnp.float32)
    z = z + lax.dot_general(vt_mm, wt, dn, preferred_element_type=jnp.float32)
    lam = jax.nn.sigmoid(z + b)                       # exp -> EUP slot
    # TODO(synk): when inputs are bf16 on v6e/v7x, blend in bf16 (halve VPU work);
    # kept in f32 here for v5e compatibility and exactness vs the f32 reference.
    a = vf_blend.astype(jnp.float32)
    c = vt_blend.astype(jnp.float32)
    return (a + lam * (c - a)).astype(out_dtype)      # == (1-lam)*Vf + lam*Vt


def _fusion_kernel_resident(vf_ref, vt_ref, wf_ref, wt_ref, b_ref, o_ref):
    vf = vf_ref[...]
    vt = vt_ref[...]
    o_ref[...] = _fuse_block(vf, vt, wf_ref[...], wt_ref[...], b_ref[...],
                             vf, vt, o_ref.dtype)


def _fusion_kernel_coltiled(vf_ref, vt_ref, vfc_ref, vtc_ref,
                            wf_ref, wt_ref, b_ref, o_ref):
    o_ref[...] = _fuse_block(vf_ref[...], vt_ref[...], wf_ref[...], wt_ref[...],
                             b_ref[...], vfc_ref[...], vtc_ref[...], o_ref.dtype)


def adaptive_fusion_ref(Vf, Vt, Wf_w, Wf_b, Wt_w, Wt_b):
    """Pure-JAX reference / small-shape fallback matching AdaptiveFusion.forward."""
    lam = jax.nn.sigmoid(Vf @ Wf_w.T + Wf_b + Vt @ Wt_w.T + Wt_b)
    return (1.0 - lam) * Vf + lam * Vt


def adaptive_fusion(Vf, Vt, Wf_w, Wf_b, Wt_w, Wt_b, *,
                    tm=512, max_tn=None, min_pallas_elems=64 * 1024):
    """Pallas implementation of AdaptiveFusion.forward.

    Vf, Vt     : (..., H) feature tensors.
    Wf_w, Wt_w : PyTorch Linear weights, (out, in) = (H, H), used as-is.
    Wf_b, Wt_b : biases, (H,).
    """
    orig_shape = Vf.shape
    H = orig_shape[-1]
    M = 1
    for d in orig_shape[:-1]:
        M *= d

    # Tiny problems: lane padding + launch overhead dominate; let XLA fuse it.
    if M * H < min_pallas_elems:
        return adaptive_fusion_ref(Vf, Vt, Wf_w, Wf_b, Wt_w, Wt_b)

    vf2 = Vf.reshape(M, H)
    vt2 = Vt.reshape(M, H)
    # Pre-added bias: one tiny (1, H) operand instead of two.
    b = (Wf_b.astype(jnp.float32) + Wt_b.astype(jnp.float32)).reshape(1, H)

    in_bytes = jnp.dtype(Vf.dtype).itemsize
    w_bytes = jnp.dtype(Wf_w.dtype).itemsize

    # Per-generation VMEM budget (v5e/v6e: 128 MiB, v7x: 64 MiB per TensorCore).
    try:
        vmem_cap = int(pltpu.get_tpu_info().vmem_capacity_bytes)
    except Exception:
        vmem_cap = 64 << 20
    if vmem_cap >= (128 << 20):
        budget, vmem_limit = 88 << 20, 100 << 20
    else:
        budget, vmem_limit = 36 << 20, 48 << 20

    # Output-column tiling (only kicks in when resident weights would blow VMEM,
    # or when forced via max_tn).  tn always divides H.
    tn = _pick_tn(H, budget, w_bytes, max_tn)
    n_col = H // tn
    w_bufs = 1 if n_col == 1 else 2
    fixed = w_bufs * 2 * tn * H * w_bytes + w_bufs * tn * 4       # weights + bias

    # Row tile: VMEM-budgeted (incl. f32 temporaries), capped so the grid has
    # >= 2 row steps and both v7x TensorCores get work.
    per_row = 2 * 2 * H * in_bytes                 # Vf, Vt row tiles (double-buffered)
    per_row += 2 * tn * in_bytes                   # output tile (double-buffered)
    if n_col > 1:
        per_row += 2 * 2 * tn * in_bytes           # column-sliced Vf, Vt for the blend
    per_row += 6 * tn * 4                          # f32 temporaries (z, lambda, blend)
    tm_cap = max(8, (budget - fixed) // per_row)
    tm = min(tm, tm_cap, _round_up(pl.cdiv(M, 2), 8))
    tm = max(8, (tm // 8) * 8)

    grid = (pl.cdiv(M, tm), n_col)    # ragged last row block handled by Pallas masking
    out_shape = jax.ShapeDtypeStruct((M, H), Vf.dtype)
    out_spec = pl.BlockSpec((tm, tn), lambda i, j: (i, j))
    params = pltpu.CompilerParams(
        dimension_semantics=("parallel", "parallel"),
        vmem_limit_bytes=vmem_limit,
    )

    def launch(single_buffer_resident):
        if n_col == 1:
            def const_spec(shape):
                if single_buffer_resident:
                    return pl.BlockSpec(shape, lambda i, j: (0, 0),
                                        pipeline_mode=pl.Buffered(1))
                return pl.BlockSpec(shape, lambda i, j: (0, 0))
            in_specs = [
                pl.BlockSpec((tm, H), lambda i, j: (i, 0)),       # Vf rows
                pl.BlockSpec((tm, H), lambda i, j: (i, 0)),       # Vt rows
                const_spec((H, H)),                               # Wf (out, in), resident
                const_spec((H, H)),                               # Wt (out, in), resident
                const_spec((1, H)),                               # pre-added bias
            ]
            kernel = _fusion_kernel_resident
            operands = (vf2, vt2, Wf_w, Wt_w, b)
        else:
            in_specs = [
                pl.BlockSpec((tm, H), lambda i, j: (i, 0)),       # Vf rows (MXU LHS)
                pl.BlockSpec((tm, H), lambda i, j: (i, 0)),       # Vt rows (MXU LHS)
                pl.BlockSpec((tm, tn), lambda i, j: (i, j)),      # Vf column slice (blend)
                pl.BlockSpec((tm, tn), lambda i, j: (i, j)),      # Vt column slice (blend)
                pl.BlockSpec((tn, H), lambda i, j: (j, 0)),       # Wf rows for this col block
                pl.BlockSpec((tn, H), lambda i, j: (j, 0)),       # Wt rows for this col block
                pl.BlockSpec((1, tn), lambda i, j: (0, j)),       # bias columns
            ]
            kernel = _fusion_kernel_coltiled
            operands = (vf2, vt2, vf2, vt2, Wf_w, Wt_w, b)
        return pl.pallas_call(
            kernel,
            out_shape=out_shape,
            grid_spec=pltpu.PrefetchScalarGridSpec(
                num_scalar_prefetch=0,
                grid=grid,
                in_specs=in_specs,
                out_specs=out_spec,
            ),
            compiler_params=params,
        )(*operands)

    if n_col == 1:
        try:
            out = launch(True)    # weights/bias single-buffered (constant block index)
        except Exception:
            # TODO(synk): drop once pl.Buffered(1) single-buffering is supported everywhere.
            out = launch(False)
    else:
        out = launch(False)

    return out.reshape(orig_shape)


if __name__ == "__main__":
    key = jax.random.PRNGKey(0)

    def make_linear(k, h):
        kw, kb = jax.random.split(k)
        bound = 1.0 / float(h) ** 0.5
        w = jax.random.uniform(kw, (h, h), jnp.float32, -bound, bound)
        b = jax.random.uniform(kb, (h,), jnp.float32, -bound, bound)
        return w, b

    # --- Module-sized config: hidden = 2*gru_size = 32, batch = 2. ---
    hidden, batch = 32, 2
    k1, k2, k3, k4, key = jax.random.split(key, 5)
    Vf = jax.random.normal(k1, (batch, hidden), jnp.float32)
    Vt = jax.random.normal(k2, (batch, hidden), jnp.float32)
    Wf_w, Wf_b = make_linear(k3, hidden)
    Wt_w, Wt_b = make_linear(k4, hidden)
    ref = adaptive_fusion_ref(Vf, Vt, Wf_w, Wf_b, Wt_w, Wt_b)

    # Force the Pallas kernel even at this tiny size (smoke test of the kernel path).
    out = jax.block_until_ready(
        adaptive_fusion(Vf, Vt, Wf_w, Wf_b, Wt_w, Wt_b, min_pallas_elems=0))
    assert out.shape == ref.shape
    assert jnp.allclose(out, ref, atol=1e-5, rtol=1e-5), "pallas (tiny, forced) mismatch"

    # Default dispatch at this size uses the fused-XLA fallback.
    out_fb = jax.block_until_ready(adaptive_fusion(Vf, Vt, Wf_w, Wf_b, Wt_w, Wt_b))
    assert jnp.allclose(out_fb, ref, atol=1e-5, rtol=1e-5), "fallback mismatch"

    # --- Larger (batch, seq, hidden) input: Pallas path, ragged row count (302 rows). ---
    hidden2 = 256
    k5, k6, k7, k8, key = jax.random.split(key, 5)
    Vf3 = jax.random.normal(k5, (2, 151, hidden2), jnp.float32)
    Vt3 = jax.random.normal(k6, (2, 151, hidden2), jnp.float32)
    Wf_w2, Wf_b2 = make_linear(k7, hidden2)
    Wt_w2, Wt_b2 = make_linear(k8, hidden2)
    ref3 = adaptive_fusion_ref(Vf3, Vt3, Wf_w2, Wf_b2, Wt_w2, Wt_b2)

    out3 = jax.block_until_ready(
        adaptive_fusion(Vf3, Vt3, Wf_w2, Wf_b2, Wt_w2, Wt_b2))
    assert jnp.allclose(out3, ref3, atol=1e-4, rtol=1e-4), "pallas (3D ragged) mismatch"

    # --- Same inputs through the output-column-tiled path (forced tn=128). ---
    out4 = jax.block_until_ready(
        adaptive_fusion(Vf3, Vt3, Wf_w2, Wf_b2, Wt_w2, Wt_b2, max_tn=128))
    assert jnp.allclose(out4, ref3, atol=1e-4, rtol=1e-4), "pallas (column-tiled) mismatch"

    print("KERNEL_OK")
</pallas_src>

<mosaic_0001>
module attributes {stable_mosaic.version = 11 : i64} {
  func.func @_fusion_kernel_resident(%arg0: i32, %arg1: i32, %arg2: memref<8x32xf32, #tpu.memory_space<vmem>>, %arg3: memref<8x32xf32, #tpu.memory_space<vmem>>, %arg4: memref<32x32xf32, #tpu.memory_space<vmem>>, %arg5: memref<32x32xf32, #tpu.memory_space<vmem>>, %arg6: memref<1x32xf32, #tpu.memory_space<vmem>>, %arg7: memref<8x32xf32, #tpu.memory_space<vmem>>) attributes {dimension_semantics = [#tpu.dimension_semantics<parallel>, #tpu.dimension_semantics<parallel>], iteration_bounds = array<i64: 1, 1>, scalar_prefetch = 0 : i64, scratch_operands = 0 : i64, tpu.core_type = #tpu.core_type<tc>, window_params = [{transform_indices = @transform_0, window_bounds = array<i64: 8, 32>}, {transform_indices = @transform_1, window_bounds = array<i64: 8, 32>}, {pipeline_mode = #tpu.pipeline_mode<synchronous>, transform_indices = @transform_2, window_bounds = array<i64: 32, 32>}, {pipeline_mode = #tpu.pipeline_mode<synchronous>, transform_indices = @transform_3, window_bounds = array<i64: 32, 32>}, {pipeline_mode = #tpu.pipeline_mode<synchronous>, transform_indices = @transform_4, window_bounds = array<i64: 1, 32>}, {transform_indices = @transform_5, window_bounds = array<i64: 8, 32>}]} {
    %c0 = arith.constant 0 : index
    %c0_0 = arith.constant 0 : index
    %0 = vector.load %arg2[%c0, %c0_0] : memref<8x32xf32, #tpu.memory_space<vmem>>, vector<8x32xf32>
    %c0_1 = arith.constant 0 : index
    %c0_2 = arith.constant 0 : index
    %1 = vector.load %arg3[%c0_1, %c0_2] : memref<8x32xf32, #tpu.memory_space<vmem>>, vector<8x32xf32>
    %c0_3 = arith.constant 0 : index
    %c0_4 = arith.constant 0 : index
    %2 = vector.load %arg4[%c0_3, %c0_4] : memref<32x32xf32, #tpu.memory_space<vmem>>, vector<32x32xf32>
    %c0_5 = arith.constant 0 : index
    %c0_6 = arith.constant 0 : index
    %3 = vector.load %arg5[%c0_5, %c0_6] : memref<32x32xf32, #tpu.memory_space<vmem>>, vector<32x32xf32>
    %c0_7 = arith.constant 0 : index
    %c0_8 = arith.constant 0 : index
    %4 = vector.load %arg6[%c0_7, %c0_8] : memref<1x32xf32, #tpu.memory_space<vmem>>, vector<1x32xf32>
    %cst = arith.constant dense<0.000000e+00> : vector<8x32xf32>
    %5 = tpu.matmul %0, %2, %cst {dimension_numbers = #tpu.dot_dimension_numbers<[1], [1], [0], [0], [0, 0, 1, 0], [], []>} : vector<8x32xf32>, vector<32x32xf32>, vector<8x32xf32> -> vector<8x32xf32>
    %cst_9 = arith.constant dense<0.000000e+00> : vector<8x32xf32>
    %6 = tpu.matmul %1, %3, %cst_9 {dimension_numbers = #tpu.dot_dimension_numbers<[1], [1], [0], [0], [0, 0, 1, 0], [], []>} : vector<8x32xf32>, vector<32x32xf32>, vector<8x32xf32> -> vector<8x32xf32>
    %7 = arith.addf %5, %6 : vector<8x32xf32>
    %8 = vector.broadcast %4 : vector<1x32xf32> to vector<8x32xf32>
    %9 = arith.addf %7, %8 : vector<8x32xf32>
    %10 = arith.negf %9 : vector<8x32xf32>
    %11 = math.exp %10 : vector<8x32xf32>
    %cst_10 = arith.constant 1.000000e+00 : f32
    %12 = vector.broadcast %cst_10 : f32 to vector<8x32xf32>
    %13 = arith.addf %12, %11 : vector<8x32xf32>
    %14 = arith.divf %12, %13 : vector<8x32xf32>
    %15 = arith.subf %1, %0 : vector<8x32xf32>
    %16 = arith.mulf %14, %15 : vector<8x32xf32>
    %17 = arith.addf %0, %16 : vector<8x32xf32>
    %c0_11 = arith.constant 0 : index
    %c0_12 = arith.constant 0 : index
    %18 = vector.load %arg7[%c0_11, %c0_12] : memref<8x32xf32, #tpu.memory_space<vmem>>, vector<8x32xf32>
    tpu.vector_store %arg7[%c0_11, %c0_12], %17 {strides = array<i32>} : memref<8x32xf32, #tpu.memory_space<vmem>>, vector<8x32xf32>,
    return
  }
  func.func @transform_0(%arg0: i32, %arg1: i32) -> (i32, i32) {
    %c0_i32 = arith.constant 0 : i32
    %c0_i32_0 = arith.constant 0 : i32
    return %arg0, %c0_i32 : i32, i32
  }
  func.func @transform_1(%arg0: i32, %arg1: i32) -> (i32, i32) {
    %c0_i32 = arith.constant 0 : i32
    %c0_i32_0 = arith.constant 0 : i32
    return %arg0, %c0_i32 : i32, i32
  }
  func.func @transform_2(%arg0: i32, %arg1: i32) -> (i32, i32) {
    %c0_i32 = arith.constant 0 : i32
    %c0_i32_0 = arith.constant 0 : i32
    %c0_i32_1 = arith.constant 0 : i32
    return %c0_i32, %c0_i32_0 : i32, i32
  }
  func.func @transform_3(%arg0: i32, %arg1: i32) -> (i32, i32) {
    %c0_i32 = arith.constant 0 : i32
    %c0_i32_0 = arith.constant 0 : i32
    %c0_i32_1 = arith.constant 0 : i32
    return %c0_i32, %c0_i32_0 : i32, i32
  }
  func.func @transform_4(%arg0: i32, %arg1: i32) -> (i32, i32) {
    %c0_i32 = arith.constant 0 : i32
    %c0_i32_0 = arith.constant 0 : i32
    %c0_i32_1 = arith.constant 0 : i32
    return %c0_i32, %c0_i32_0 : i32, i32
  }
  func.func @transform_5(%arg0: i32, %arg1: i32) -> (i32, i32) {
    %c0_i32 = arith.constant 0 : i32
    return %arg0, %arg1 : i32, i32
  }
}

module attributes {stable_mosaic.version = 11 : i64} {
  func.func @_fusion_kernel_resident(%arg0: i32, %arg1: i32, %arg2: memref<8x32xf32, #tpu.memory_space<vmem>>, %arg3: memref<8x32xf32, #tpu.memory_space<vmem>>, %arg4: memref<32x32xf32, #tpu.memory_space<vmem>>, %arg5: memref<32x32xf32, #tpu.memory_space<vmem>>, %arg6: memref<1x32xf32, #tpu.memory_space<vmem>>, %arg7: memref<8x32xf32, #tpu.memory_space<vmem>>) attributes {dimension_semantics = [#tpu.dimension_semantics<parallel>, #tpu.dimension_semantics<parallel>], iteration_bounds = array<i64: 1, 1>, scalar_prefetch = 0 : i64, scratch_operands = 0 : i64, tpu.core_type = #tpu.core_type<tc>, window_params = [{transform_indices = @transform_0, window_bounds = array<i64: 8, 32>}, {transform_indices = @transform_1, window_bounds = array<i64: 8, 32>}, {pipeline_mode = #tpu.pipeline_mode<synchronous>, transform_indices = @transform_2, window_bounds = array<i64: 32, 32>}, {pipeline_mode = #tpu.pipeline_mode<synchronous>, transform_indices = @transform_3, window_bounds = array<i64: 32, 32>}, {pipeline_mode = #tpu.pipeline_mode<synchronous>, transform_indices = @transform_4, window_bounds = array<i64: 1, 32>}, {transform_indices = @transform_5, window_bounds = array<i64: 8, 32>}]} {
    %c0 = arith.constant 0 : index
    %c0_0 = arith.constant 0 : index
    %0 = vector.load %arg2[%c0, %c0_0] : memref<8x32xf32, #tpu.memory_space<vmem>>, vector<8x32xf32>
    %c0_1 = arith.constant 0 : index
    %c0_2 = arith.constant 0 : index
    %1 = vector.load %arg3[%c0_1, %c0_2] : memref<8x32xf32, #tpu.memory_space<vmem>>, vector<8x32xf32>
    %c0_3 = arith.constant 0 : index
    %c0_4 = arith.constant 0 : index
    %2 = vector.load %arg4[%c0_3, %c0_4] : memref<32x32xf32, #tpu.memory_space<vmem>>, vector<32x32xf32>
    %c0_5 = arith.constant 0 : index
    %c0_6 = arith.constant 0 : index
    %3 = vector.load %arg5[%c0_5, %c0_6] : memref<32x32xf32, #tpu.memory_space<vmem>>, vector<32x32xf32>
    %c0_7 = arith.constant 0 : index
    %c0_8 = arith.constant 0 : index
    %4 = vector.load %arg6[%c0_7, %c0_8] : memref<1x32xf32, #tpu.memory_space<vmem>>, vector<1x32xf32>
    %cst = arith.constant dense<0.000000e+00> : vector<8x32xf32>
    %5 = tpu.matmul %0, %2, %cst {dimension_numbers = #tpu.dot_dimension_numbers<[1], [1], [0], [0], [0, 0, 1, 0], [], []>} : vector<8x32xf32>, vector<32x32xf32>, vector<8x32xf32> -> vector<8x32xf32>
    %cst_9 = arith.constant dense<0.000000e+00> : vector<8x32xf32>
    %6 = tpu.matmul %1, %3, %cst_9 {dimension_numbers = #tpu.dot_dimension_numbers<[1], [1], [0], [0], [0, 0, 1, 0], [], []>} : vector<8x32xf32>, vector<32x32xf32>, vector<8x32xf32> -> vector<8x32xf32>
    %7 = arith.addf %5, %6 : vector<8x32xf32>
    %8 = vector.broadcast %4 : vector<1x32xf32> to vector<8x32xf32>
    %9 = arith.addf %7, %8 : vector<8x32xf32>
    %10 = arith.negf %9 : vector<8x32xf32>
    %11 = math.exp %10 : vector<8x32xf32>
    %cst_10 = arith.constant 1.000000e+00 : f32
    %12 = vector.broadcast %cst_10 : f32 to vector<8x32xf32>
    %13 = arith.addf %12, %11 : vector<8x32xf32>
    %14 = arith.divf %12, %13 : vector<8x32xf32>
    %15 = arith.subf %1, %0 : vector<8x32xf32>
    %16 = arith.mulf %14, %15 : vector<8x32xf32>
    %17 = arith.addf %0, %16 : vector<8x32xf32>
    %c0_11 = arith.constant 0 : index
    %c0_12 = arith.constant 0 : index
    %18 = vector.load %arg7[%c0_11, %c0_12] : memref<8x32xf32, #tpu.memory_space<vmem>>, vector<8x32xf32>
    tpu.vector_store %arg7[%c0_11, %c0_12], %17 {strides = array<i32>} : memref<8x32xf32, #tpu.memory_space<vmem>>, vector<8x32xf32>,
    return
  }
  func.func @transform_0(%arg0: i32, %arg1: i32) -> (i32, i32) {
    %c0_i32 = arith.constant 0 : i32
    %c0_i32_0 = arith.constant 0 : i32
    return %arg0, %c0_i32 : i32, i32
  }
  func.func @transform_1(%arg0: i32, %arg1: i32) -> (i32, i32) {
    %c0_i32 = arith.constant 0 : i32
    %c0_i32_0 = arith.constant 0 : i32
    return %arg0, %c0_i32 : i32, i32
  }
  func.func @transform_2(%arg0: i32, %arg1: i32) -> (i32, i32) {
    %c0_i32 = arith.constant 0 : i32
    %c0_i32_0 = arith.constant 0 : i32
    %c0_i32_1 = arith.constant 0 : i32
    return %c0_i32, %c0_i32_0 : i32, i32
  }
  func.func @transform_3(%arg0: i32, %arg1: i32) -> (i32, i32) {
    %c0_i32 = arith.constant 0 : i32
    %c0_i32_0 = arith.constant 0 : i32
    %c0_i32_1 = arith.constant 0 : i32
    return %c0_i32, %c0_i32_0 : i32, i32
  }
  func.func @transform_4(%arg0: i32, %arg1: i32) -> (i32, i32) {
    %c0_i32 = arith.constant 0 : i32
    %c0_i32_0 = arith.constant 0 : i32
    %c0_i32_1 = arith.constant 0 : i32
    return %c0_i32, %c0_i32_0 : i32, i32
  }
  func.func @transform_5(%arg0: i32, %arg1: i32) -> (i32, i32) {
    %c0_i32 = arith.constant 0 : i32
    return %arg0, %arg1 : i32, i32
  }
}

</mosaic_0001>

<llo_original>
// kernel: tpu_custom_call.1
$region0: #{tpu_custom_call.1}
  #allocation0 [shape = 'u32[]', space=smem, size = 0x4, offset = 0x4, fixed_abs, tag = 'smem constant byte address 0x4 - core index']
  #allocation1 [shape = 'u32[144,128]{1,0:T(1,128)}', space=vmem, size = 0x12000, scoped, tag = 'internal scratch']
  %s0 = inlined_call_operand.hbm [shape: f32[2,32], index: 0, kind: input, shape index: {}]
  %s1 = inlined_call_operand.hbm [shape: f32[2,32], index: 1, kind: input, shape index: {}]
  %s2 = inlined_call_operand.hbm [shape: f32[32,32], index: 2, kind: input, shape index: {}]
  %s3 = inlined_call_operand.hbm [shape: f32[32,32], index: 3, kind: input, shape index: {}]
  %s4 = inlined_call_operand.vmem [shape: f32[1,32], index: 4, kind: input, shape index: {}]
  %s5 = inlined_call_operand.hbm [shape: f32[2,32], index: 5, kind: output, shape index: {}]
  %s6 = sld [smem:[#allocation0]]
  $region46: #{tpu_custom_call.1} parent=0
    _
  %s8 = ssub.s32 1, %s6
  %s9 = scalar_select 0, %s8, %s6
  $region1: #{tpu_custom_call.1} parent=0
    #allocation2 [shape = 'u8[4096]{0}', space=vmem, size = 0x1000, scoped, tag = 'input window, operand 0, single buffered']
    #allocation3 [shape = 's32[1]{0}', space=sflag, size = 0x4, scoped, tag = 'scoped memory for tpu_custom_call.1']
    #allocation4 [shape = 's32[1]{0}', space=sflag, size = 0x4, scoped, tag = 'scoped memory for tpu_custom_call.1']
    #allocation5 [shape = 'u8[4096]{0}', space=vmem, size = 0x1000, scoped, tag = 'input window, operand 1, single buffered']
    #allocation6 [shape = 's32[1]{0}', space=sflag, size = 0x4, scoped, tag = 'scoped memory for tpu_custom_call.1']
    #allocation7 [shape = 'u8[16384]{0}', space=vmem, size = 0x4000, scoped, tag = 'input window, operand 2, single buffered']
    #allocation8 [shape = 'u8[16384]{0}', space=vmem, size = 0x4000, scoped, tag = 'input window, operand 3, single buffered']
    #allocation9 [shape = 's32[1]{0}', space=sflag, size = 0x4, scoped, tag = 'scoped memory for tpu_custom_call.1']
    #allocation10 [shape = 'u8[4096]{0}', space=vmem, size = 0x1000, scoped, tag = 'output window, operand 0, single buffered']
    %10 = vsyncpa [#allocation3], 0
    %11 = vsyncpa [#allocation6], 0
    %12 = vsyncpa [#allocation9], 0
    %13 = vsyncpa [#allocation4], 0
    // Predicated region
    $region2: #{tpu_custom_call.1} parent=1 // pred_check
      _
    $region3: #{tpu_custom_call.1} parent=1 // pred_check_branch
      %15 = sbr.rel (0) target = $region5
    $region4: #{tpu_custom_call.1} parent=1 // pred_region
      %s17 = ssub.s32 128, 32
      %18 = vsyncadd [#allocation3], %s17
      %s19 = sshll.u32 [#allocation2], 4
      %s20 = int_to_ptr.vmem [resolvable:$true] %s19
      %25 = dma.hbm_to_vmem [thread:$0]  %s0, 32, %s20, [#allocation3], 32, 32, 2
    $region5: #{tpu_custom_call.1} parent=1 // pred_fallthru
      _
    // Predicated region
    $region6: #{tpu_custom_call.1} parent=1 // pred_check
      _
    $region7: #{tpu_custom_call.1} parent=1 // pred_check_branch
      %27 = sbr.rel (0) target = $region9
    $region8: #{tpu_custom_call.1} parent=1 // pred_region
      %s29 = ssub.s32 128, 32
      %30 = vsyncadd [#allocation6], %s29
      %s31 = sshll.u32 [#allocation5], 4
      %s32 = int_to_ptr.vmem [resolvable:$true] %s31
      %37 = dma.hbm_to_vmem [thread:$0]  %s1, 32, %s32, [#allocation6], 32, 32, 2
    $region9: #{tpu_custom_call.1} parent=1 // pred_fallthru
      _
    // Predicated region
    $region10: #{tpu_custom_call.1} parent=1 // pred_check
      _
    $region11: #{tpu_custom_call.1} parent=1 // pred_check_branch
      %39 = sbr.rel (0) target = $region13
    $region12: #{tpu_custom_call.1} parent=1 // pred_region
      %s41 = ssub.s32 512, 512
      %42 = vsyncadd [#allocation6], %s41
      %s43 = sshll.u32 [#allocation7], 4
      %s44 = int_to_ptr.vmem [resolvable:$true] %s43
      %49 = dma.hbm_to_vmem [thread:$0]  %s2, 512, %s44, [#allocation6], 128, 128, 8
    $region13: #{tpu_custom_call.1} parent=1 // pred_fallthru
      _
    // Predicated region
    $region14: #{tpu_custom_call.1} parent=1 // pred_check
      _
    $region15: #{tpu_custom_call.1} parent=1 // pred_check_branch
      %51 = sbr.rel (0) target = $region17
    $region16: #{tpu_custom_call.1} parent=1 // pred_region
      %s53 = ssub.s32 512, 512
      %54 = vsyncadd [#allocation9], %s53
      %s55 = sshll.u32 [#allocation8], 4
      %s56 = int_to_ptr.vmem [resolvable:$true] %s55
      %61 = dma.hbm_to_vmem [thread:$0]  %s3, 512, %s56, [#allocation9], 128, 128, 8
    $region17: #{tpu_custom_call.1} parent=1 // pred_fallthru
      _
    // Predicated region
    $region18: #{tpu_custom_call.1} parent=1 // pred_check
      _
    $region19: #{tpu_custom_call.1} parent=1 // pred_check_branch
      %63 = sbr.rel (0) target = $region21
    $region20: #{tpu_custom_call.1} parent=1 // pred_region
      _
    $region21: #{tpu_custom_call.1} parent=1 // pred_fallthru
      _
    // Predicated region
    $region22: #{tpu_custom_call.1} parent=1 // pred_check
      _
    $region23: #{tpu_custom_call.1} parent=1 // pred_check_branch
      %65 = sbr.rel (0) target = $region25
    $region24: #{tpu_custom_call.1} parent=1 // pred_region
      %66 = dma.done [#allocation3], 128
    $region25: #{tpu_custom_call.1} parent=1 // pred_fallthru
      _
    // Predicated region
    $region26: #{tpu_custom_call.1} parent=1 // pred_check
      _
    $region27: #{tpu_custom_call.1} parent=1 // pred_check_branch
      %68 = sbr.rel (0) target = $region29
    $region28: #{tpu_custom_call.1} parent=1 // pred_region
      %69 = dma.done [#allocation6], 128
    $region29: #{tpu_custom_call.1} parent=1 // pred_fallthru
      _
    // Predicated region
    $region30: #{tpu_custom_call.1} parent=1 // pred_check
      _
    $region31: #{tpu_custom_call.1} parent=1 // pred_check_branch
      %71 = sbr.rel (0) target = $region33
    $region32: #{tpu_custom_call.1} parent=1 // pred_region
      %72 = dma.done [#allocation6], 512
    $region33: #{tpu_custom_call.1} parent=1 // pred_fallthru
      _
    // Predicated region
    $region34: #{tpu_custom_call.1} parent=1 // pred_check
      _
    $region35: #{tpu_custom_call.1} parent=1 // pred_check_branch
      %74 = sbr.rel (0) target = $region37
    $region36: #{tpu_custom_call.1} parent=1 // pred_region
      %75 = dma.done [#allocation9], 512
    $region37: #{tpu_custom_call.1} parent=1 // pred_fallthru
      _
    %v76 = vld [vmem:[#allocation2] sm:$0xff]
    %v77 = vld [vmem:[#allocation5] sm:$0xff]
    %v78 = vld [vmem:[#allocation7] sm:$0xff]
    %v79 = vld [vmem:[#allocation7 + $0x8] sm:$0xff]
    %v80 = vld [vmem:[#allocation7 + $0x10] sm:$0xff]
    %v81 = vld [vmem:[#allocation7 + $0x18] sm:$0xff]
    %v82 = vld [vmem:[#allocation8] sm:$0xff]
    %v83 = vld [vmem:[#allocation8 + $0x8] sm:$0xff]
    %v84 = vld [vmem:[#allocation8 + $0x10] sm:$0xff]
    %v85 = vld [vmem:[#allocation8 + $0x18] sm:$0xff]
    %v86 = vld [vmem:[%s4] sm:$0x1]
    %vm87 = vcmask 261120
    %v89 = vsel %vm87, %v77, 0
    %v92 = vsel %vm87, %v82, 0
    %v95 = vsel %vm87, %v83, 0
    %v98 = vsel %vm87, %v84, 0
    %v101 = vsel %vm87, %v85, 0
    %103 = vmatprep.subr.mxu0 0.0
    %104 = vmatpush1.xpose.msra.mxu0 0.0
    %105 = vmatprep.subr.mxu0 0.0
    %106 = vmatpush1.xpose.msra.mxu0 0.0
    %107 = vmatprep.subr.mxu0 0.0
    %108 = vmatpush1.xpose.msra.mxu0 0.0
    %109 = vmatprep.subr.mxu0 0.0
    %110 = vmatpush1.xpose.msra.mxu0 0.0
    %111 = vmatprep.subr.mxu0 0.0
    %112 = vmatpush1.xpose.msra.mxu0 0.0
    %113 = vmatprep.subr.mxu0 0.0
    %114 = vmatpush1.xpose.msra.mxu0 0.0
    %115 = vmatprep.subr.mxu0 0.0
    %116 = vmatpush1.xpose.msra.mxu0 0.0
    %117 = vmatprep.subr.mxu0 0.0
    %118 = vmatpush1.xpose.msra.mxu0 0.0
    %119 = vmatprep.subr.mxu0 0.0
    %120 = vmatpush1.xpose.msra.mxu0 0.0
    %121 = vmatprep.subr.mxu0 0.0
    %122 = vmatpush1.xpose.msra.mxu0 0.0
    %123 = vmatprep.subr.mxu0 0.0
    %124 = vmatpush1.xpose.msra.mxu0 0.0
    %125 = vmatprep.subr.mxu0 0.0
    %126 = vmatpush1.xpose.msra.mxu0 0.0
    %127 = vmatprep.subr.mxu0 0.0
    %128 = vmatpush1.xpose.msra.mxu0 %v101
    %129 = vmatprep.subr.mxu0 0.0
    %130 = vmatpush1.xpose.msra.mxu0 %v98
    %131 = vmatprep.subr.mxu0 0.0
    %132 = vmatpush1.xpose.msra.mxu0 %v95
    %133 = vmatprep.subr.mxu0 0.0
    %134 = vmatpush1.xpose.msra.mxu0 %v92
    %135 = vmatprep.subr.mxu0 0.0
    %136 = vmatpush2.xpose.msra.mxu0 0.0
    %137 = vmatprep.subr.mxu0 0.0
    %138 = vmatpush2.xpose.msra.mxu0 0.0
    %139 = vmatprep.subr.mxu0 0.0
    %140 = vmatpush2.xpose.msra.mxu0 0.0
    %141 = vmatprep.subr.mxu0 0.0
    %142 = vmatpush2.xpose.msra.mxu0 0.0
    %143 = vmatprep.subr.mxu0 0.0
    %144 = vmatpush2.xpose.msra.mxu0 0.0
    %145 = vmatprep.subr.mxu0 0.0
    %146 = vmatpush2.xpose.msra.mxu0 0.0
    %147 = vmatprep.subr.mxu0 0.0
    %148 = vmatpush2.xpose.msra.mxu0 0.0
    %149 = vmatprep.subr.mxu0 0.0
    %150 = vmatpush2.xpose.msra.mxu0 0.0
    %151 = vmatprep.subr.mxu0 0.0
    %152 = vmatpush2.xpose.msra.mxu0 0.0
    %153 = vmatprep.subr.mxu0 0.0
    %154 = vmatpush2.xpose.msra.mxu0 0.0
    %155 = vmatprep.subr.mxu0 0.0
    %156 = vmatpush2.xpose.msra.mxu0 0.0
    %157 = vmatprep.subr.mxu0 0.0
    %158 = vmatpush2.xpose.msra.mxu0 0.0
    %159 = vmatprep.subr.mxu0 0.0
    %160 = vmatpush2.xpose.msra.mxu0 0.0
    %161 = vmatprep.subr.mxu0 0.0
    %162 = vmatpush2.xpose.msra.mxu0 0.0
    %163 = vmatprep.subr.mxu0 0.0
    %164 = vmatpush2.xpose.msra.mxu0 0.0
    %165 = vmatprep.subr.mxu0 0.0
    %166 = vmatpush2.xpose.msra.mxu0 0.0
    %167 = vmatprep.mubr.f32.mxu0 0.0
    %168 = vmatmul.mubr.f32.gmra.mxu0 %v89
    %v169 = vpop.f32.mrf.mxu0
    %v170 = vadd.f32 0.0, %v169
    %v171 = vpop.f32.mrf.mxu0
    %172 = vdwg.mxu0
    %v174 = vsel %vm87, %v76, 0
    %v177 = vsel %vm87, %v78, 0
    %v180 = vsel %vm87, %v79, 0
    %v183 = vsel %vm87, %v80, 0
    %v186 = vsel %vm87, %v81, 0
    %188 = vmatprep.subr.mxu0 0.0
    %189 = vmatpush1.xpose.msra.mxu0 0.0
    %190 = vmatprep.subr.mxu0 0.0
    %191 = vmatpush1.xpose.msra.mxu0 0.0
    %192 = vmatprep.subr.mxu0 0.0
    %193 = vmatpush1.xpose.msra.mxu0 0.0
    %194 = vmatprep.subr.mxu0 0.0
    %195 = vmatpush1.xpose.msra.mxu0 0.0
    %196 = vmatprep.subr.mxu0 0.0
    %197 = vmatpush1.xpose.msra.mxu0 0.0
    %198 = vmatprep.subr.mxu0 0.0
    %199 = vmatpush1.xpose.msra.mxu0 0.0
    %200 = vmatprep.subr.mxu0 0.0
    %201 = vmatpush1.xpose.msra.mxu0 0.0
    %202 = vmatprep.subr.mxu0 0.0
    %203 = vmatpush1.xpose.msra.mxu0 0.0
    %204 = vmatprep.subr.mxu0 0.0
    %205 = vmatpush1.xpose.msra.mxu0 0.0
    %206 = vmatprep.subr.mxu0 0.0
    %207 = vmatpush1.xpose.msra.mxu0 0.0
    %208 = vmatprep.subr.mxu0 0.0
    %209 = vmatpush1.xpose.msra.mxu0 0.0
    %210 = vmatprep.subr.mxu0 0.0
    %211 = vmatpush1.xpose.msra.mxu0 0.0
    %212 = vmatprep.subr.mxu0 0.0
    %213 = vmatpush1.xpose.msra.mxu0 %v186
    %214 = vmatprep.subr.mxu0 0.0
    %215 = vmatpush1.xpose.msra.mxu0 %v183
    %216 = vmatprep.subr.mxu0 0.0
    %217 = vmatpush1.xpose.msra.mxu0 %v180
    %218 = vmatprep.subr.mxu0 0.0
    %219 = vmatpush1.xpose.msra.mxu0 %v177
    %220 = vmatprep.subr.mxu0 0.0
    %221 = vmatpush2.xpose.msra.mxu0 0.0
    %222 = vmatprep.subr.mxu0 0.0
    %223 = vmatpush2.xpose.msra.mxu0 0.0
    %224 = vmatprep.subr.mxu0 0.0
    %225 = vmatpush2.xpose.msra.mxu0 0.0
    %226 = vmatprep.subr.mxu0 0.0
    %227 = vmatpush2.xpose.msra.mxu0 0.0
    %228 = vmatprep.subr.mxu0 0.0
    %229 = vmatpush2.xpose.msra.mxu0 0.0
    %230 = vmatprep.subr.mxu0 0.0
    %231 = vmatpush2.xpose.msra.mxu0 0.0
    %232 = vmatprep.subr.mxu0 0.0
    %233 = vmatpush2.xpose.msra.mxu0 0.0
    %234 = vmatprep.subr.mxu0 0.0
    %235 = vmatpush2.xpose.msra.mxu0 0.0
    %236 = vmatprep.subr.mxu0 0.0
    %237 = vmatpush2.xpose.msra.mxu0 0.0
    %238 = vmatprep.subr.mxu0 0.0
    %239 = vmatpush2.xpose.msra.mxu0 0.0
    %240 = vmatprep.subr.mxu0 0.0
    %241 = vmatpush2.xpose.msra.mxu0 0.0
    %242 = vmatprep.subr.mxu0 0.0
    %243 = vmatpush2.xpose.msra.mxu0 0.0
    %244 = vmatprep.subr.mxu0 0.0
    %245 = vmatpush2.xpose.msra.mxu0 0.0
    %246 = vmatprep.subr.mxu0 0.0
    %247 = vmatpush2.xpose.msra.mxu0 0.0
    %248 = vmatprep.subr.mxu0 0.0
    %249 = vmatpush2.xpose.msra.mxu0 0.0
    %250 = vmatprep.subr.mxu0 0.0
    %251 = vmatpush2.xpose.msra.mxu0 0.0
    %252 = vmatprep.mubr.f32.mxu0 0.0
    %253 = vmatmul.mubr.f32.gmra.mxu0 %v174
    %v254 = vpop.f32.mrf.mxu0
    %v255 = vadd.f32 %v170, %v254
    %v256 = vpop.f32.mrf.mxu0
    %257 = vdwg.mxu0
    %v259 = vlaneseq
    %v260 = vshrl.u32 %v259, 7
    %v261 = vsub.s32 0, %v260
    %v262 = vrot.slane %v86, %v261
    %v264 = vadd.f32 %v255, %v262
    %v265 = vxor.u32 %v264, 2147483648
    %v266 = vmul.f32 %v265, 1.442695
    %v267 = vpow.pop %v266
    %v268 = vadd.f32 %v267, 1.0
    %v269 = vrcp.pop %v268
    %v270 = vmul.f32 1.0, %v269
    %v271 = vsub.f32 %v77, %v76
    %v272 = vmul.f32 %v270, %v271
    %v273 = vadd.f32 %v76, %v272
    %274 = vst.msk [vmem:[#allocation10] sm:$0xff] %vm87, %v273
    // Predicated region
    $region38: #{tpu_custom_call.1} parent=1 // pred_check
      _
    $region39: #{tpu_custom_call.1} parent=1 // pred_check_branch
      %276 = sbr.rel (0) target = $region41
    $region40: #{tpu_custom_call.1} parent=1 // pred_region
      %s278 = ssub.s32 128, 32
      %279 = vsyncadd [#allocation4], %s278
      %s280 = sshll.u32 [#allocation10], 4
      %s281 = int_to_ptr.vmem [resolvable:$true] %s280
      %286 = dma.vmem_to_hbm [thread:$0]  %s281, 32, %s5, [#allocation4], 32, 32, 2
    $region41: #{tpu_custom_call.1} parent=1 // pred_fallthru
      _
    // Predicated region
    $region42: #{tpu_custom_call.1} parent=1 // pred_check
      _
    $region43: #{tpu_custom_call.1} parent=1 // pred_check_branch
      %288 = sbr.rel (0) target = $region45
    $region44: #{tpu_custom_call.1} parent=1 // pred_region
      %289 = dma.done [#allocation4], 128
    $region45: #{tpu_custom_call.1} parent=1 // pred_fallthru
      _
    %290 = vsyncpa [#allocation3], 1
    %291 = vsyncpa [#allocation6], 1
    %292 = vsyncpa [#allocation9], 1
    %293 = vsyncpa [#allocation4], 1

// kernel: tpu_custom_call.1
$region0: #{tpu_custom_call.1}
  #allocation0 [shape = 'u32[]', space=smem, size = 0x4, offset = 0x4, fixed_abs, tag = 'smem constant byte address 0x4 - core index']
  #allocation1 [shape = 'u32[144,128]{1,0:T(1,128)}', space=vmem, size = 0x12000, scoped, tag = 'internal scratch']
  %s0 = inlined_call_operand.hbm [shape: f32[2,32], index: 0, kind: input, shape index: {}]
  %s1 = inlined_call_operand.hbm [shape: f32[2,32], index: 1, kind: input, shape index: {}]
  %s2 = inlined_call_operand.hbm [shape: f32[32,32], index: 2, kind: input, shape index: {}]
  %s3 = inlined_call_operand.hbm [shape: f32[32,32], index: 3, kind: input, shape index: {}]
  %s4 = inlined_call_operand.vmem [shape: f32[1,32], index: 4, kind: input, shape index: {}]
  %s5 = inlined_call_operand.hbm [shape: f32[2,32], index: 5, kind: output, shape index: {}]
  %s6 = sld [smem:[#allocation0]]
  $region46: #{tpu_custom_call.1} parent=0
    _
  %s8 = ssub.s32 1, %s6
  %s9 = scalar_select 0, %s8, %s6
  $region1: #{tpu_custom_call.1} parent=0
    #allocation2 [shape = 'u8[4096]{0}', space=vmem, size = 0x1000, scoped, tag = 'input window, operand 0, single buffered']
    #allocation3 [shape = 's32[1]{0}', space=sflag, size = 0x4, scoped, tag = 'scoped memory for tpu_custom_call.1']
    #allocation4 [shape = 's32[1]{0}', space=sflag, size = 0x4, scoped, tag = 'scoped memory for tpu_custom_call.1']
    #allocation5 [shape = 'u8[4096]{0}', space=vmem, size = 0x1000, scoped, tag = 'input window, operand 1, single buffered']
    #allocation6 [shape = 's32[1]{0}', space=sflag, size = 0x4, scoped, tag = 'scoped memory for tpu_custom_call.1']
    #allocation7 [shape = 'u8[16384]{0}', space=vmem, size = 0x4000, scoped, tag = 'input window, operand 2, single buffered']
    #allocation8 [shape = 'u8[16384]{0}', space=vmem, size = 0x4000, scoped, tag = 'input window, operand 3, single buffered']
    #allocation9 [shape = 's32[1]{0}', space=sflag, size = 0x4, scoped, tag = 'scoped memory for tpu_custom_call.1']
    #allocation10 [shape = 'u8[4096]{0}', space=vmem, size = 0x1000, scoped, tag = 'output window, operand 0, single buffered']
    %10 = vsyncpa [#allocation3], 0
    %11 = vsyncpa [#allocation6], 0
    %12 = vsyncpa [#allocation9], 0
    %13 = vsyncpa [#allocation4], 0
    // Predicated region
    $region2: #{tpu_custom_call.1} parent=1 // pred_check
      _
    $region3: #{tpu_custom_call.1} parent=1 // pred_check_branch
      %15 = sbr.rel (0) target = $region5
    $region4: #{tpu_custom_call.1} parent=1 // pred_region
      %s17 = ssub.s32 128, 32
      %18 = vsyncadd [#allocation3], %s17
      %s19 = sshll.u32 [#allocation2], 4
      %s20 = int_to_ptr.vmem [resolvable:$true] %s19
      %25 = dma.hbm_to_vmem [thread:$0]  %s0, 32, %s20, [#allocation3], 32, 32, 2
    $region5: #{tpu_custom_call.1} parent=1 // pred_fallthru
      _
    // Predicated region
    $region6: #{tpu_custom_call.1} parent=1 // pred_check
      _
    $region7: #{tpu_custom_call.1} parent=1 // pred_check_branch
      %27 = sbr.rel (0) target = $region9
    $region8: #{tpu_custom_call.1} parent=1 // pred_region
      %s29 = ssub.s32 128, 32
      %30 = vsyncadd [#allocation6], %s29
      %s31 = sshll.u32 [#allocation5], 4
      %s32 = int_to_ptr.vmem [resolvable:$true] %s31
      %37 = dma.hbm_to_vmem [thread:$0]  %s1, 32, %s32, [#allocation6], 32, 32, 2
    $region9: #{tpu_custom_call.1} parent=1 // pred_fallthru
      _
    // Predicated region
    $region10: #{tpu_custom_call.1} parent=1 // pred_check
      _
    $region11: #{tpu_custom_call.1} parent=1 // pred_check_branch
      %39 = sbr.rel (0) target = $region13
    $region12: #{tpu_custom_call.1} parent=1 // pred_region
      %s41 = ssub.s32 512, 512
      %42 = vsyncadd [#allocation6], %s41
      %s43 = sshll.u32 [#allocation7], 4
      %s44 = int_to_ptr.vmem [resolvable:$true] %s43
      %49 = dma.hbm_to_vmem [thread:$0]  %s2, 512, %s44, [#allocation6], 128, 128, 8
    $region13: #{tpu_custom_call.1} parent=1 // pred_fallthru
      _
    // Predicated region
    $region14: #{tpu_custom_call.1} parent=1 // pred_check
      _
    $region15: #{tpu_custom_call.1} parent=1 // pred_check_branch
      %51 = sbr.rel (0) target = $region17
    $region16: #{tpu_custom_call.1} parent=1 // pred_region
      %s53 = ssub.s32 512, 512
      %54 = vsyncadd [#allocation9], %s53
      %s55 = sshll.u32 [#allocation8], 4
      %s56 = int_to_ptr.vmem [resolvable:$true] %s55
      %61 = dma.hbm_to_vmem [thread:$0]  %s3, 512, %s56, [#allocation9], 128, 128, 8
    $region17: #{tpu_custom_call.1} parent=1 // pred_fallthru
      _
    // Predicated region
    $region18: #{tpu_custom_call.1} parent=1 // pred_check
      _
    $region19: #{tpu_custom_call.1} parent=1 // pred_check_branch
      %63 = sbr.rel (0) target = $region21
    $region20: #{tpu_custom_call.1} parent=1 // pred_region
      _
    $region21: #{tpu_custom_call.1} parent=1 // pred_fallthru
      _
    // Predicated region
    $region22: #{tpu_custom_call.1} parent=1 // pred_check
      _
    $region23: #{tpu_custom_call.1} parent=1 // pred_check_branch
      %65 = sbr.rel (0) target = $region25
    $region24: #{tpu_custom_call.1} parent=1 // pred_region
      %66 = dma.done [#allocation3], 128
    $region25: #{tpu_custom_call.1} parent=1 // pred_fallthru
      _
    // Predicated region
    $region26: #{tpu_custom_call.1} parent=1 // pred_check
      _
    $region27: #{tpu_custom_call.1} parent=1 // pred_check_branch
      %68 = sbr.rel (0) target = $region29
    $region28: #{tpu_custom_call.1} parent=1 // pred_region
      %69 = dma.done [#allocation6], 128
    $region29: #{tpu_custom_call.1} parent=1 // pred_fallthru
      _
    // Predicated region
    $region30: #{tpu_custom_call.1} parent=1 // pred_check
      _
    $region31: #{tpu_custom_call.1} parent=1 // pred_check_branch
      %71 = sbr.rel (0) target = $region33
    $region32: #{tpu_custom_call.1} parent=1 // pred_region
      %72 = dma.done [#allocation6], 512
    $region33: #{tpu_custom_call.1} parent=1 // pred_fallthru
      _
    // Predicated region
    $region34: #{tpu_custom_call.1} parent=1 // pred_check
      _
    $region35: #{tpu_custom_call.1} parent=1 // pred_check_branch
      %74 = sbr.rel (0) target = $region37
    $region36: #{tpu_custom_call.1} parent=1 // pred_region
      %75 = dma.done [#allocation9], 512
    $region37: #{tpu_custom_call.1} parent=1 // pred_fallthru
      _
    %v76 = vld [vmem:[#allocation2] sm:$0xff]
    %v77 = vld [vmem:[#allocation5] sm:$0xff]
    %v78 = vld [vmem:[#allocation7] sm:$0xff]
    %v79 = vld [vmem:[#allocation7 + $0x8] sm:$0xff]
    %v80 = vld [vmem:[#allocation7 + $0x10] sm:$0xff]
    %v81 = vld [vmem:[#allocation7 + $0x18] sm:$0xff]
    %v82 = vld [vmem:[#allocation8] sm:$0xff]
    %v83 = vld [vmem:[#allocation8 + $0x8] sm:$0xff]
    %v84 = vld [vmem:[#allocation8 + $0x10] sm:$0xff]
    %v85 = vld [vmem:[#allocation8 + $0x18] sm:$0xff]
    %v86 = vld [vmem:[%s4] sm:$0x1]
    %vm87 = vcmask 261120
    %v89 = vsel %vm87, %v77, 0
    %v92 = vsel %vm87, %v82, 0
    %v95 = vsel %vm87, %v83, 0
    %v98 = vsel %vm87, %v84, 0
    %v101 = vsel %vm87, %v85, 0
    %103 = vmatprep.subr.mxu0 0.0
    %104 = vmatpush1.xpose.msra.mxu0 0.0
    %105 = vmatprep.subr.mxu0 0.0
    %106 = vmatpush1.xpose.msra.mxu0 0.0
    %107 = vmatprep.subr.mxu0 0.0
    %108 = vmatpush1.xpose.msra.mxu0 0.0
    %109 = vmatprep.subr.mxu0 0.0
    %110 = vmatpush1.xpose.msra.mxu0 0.0
    %111 = vmatprep.subr.mxu0 0.0
    %112 = vmatpush1.xpose.msra.mxu0 0.0
    %113 = vmatprep.subr.mxu0 0.0
    %114 = vmatpush1.xpose.msra.mxu0 0.0
    %115 = vmatprep.subr.mxu0 0.0
    %116 = vmatpush1.xpose.msra.mxu0 0.0
    %117 = vmatprep.subr.mxu0 0.0
    %118 = vmatpush1.xpose.msra.mxu0 0.0
    %119 = vmatprep.subr.mxu0 0.0
    %120 = vmatpush1.xpose.msra.mxu0 0.0
    %121 = vmatprep.subr.mxu0 0.0
    %122 = vmatpush1.xpose.msra.mxu0 0.0
    %123 = vmatprep.subr.mxu0 0.0
    %124 = vmatpush1.xpose.msra.mxu0 0.0
    %125 = vmatprep.subr.mxu0 0.0
    %126 = vmatpush1.xpose.msra.mxu0 0.0
    %127 = vmatprep.subr.mxu0 0.0
    %128 = vmatpush1.xpose.msra.mxu0 %v101
    %129 = vmatprep.subr.mxu0 0.0
    %130 = vmatpush1.xpose.msra.mxu0 %v98
    %131 = vmatprep.subr.mxu0 0.0
    %132 = vmatpush1.xpose.msra.mxu0 %v95
    %133 = vmatprep.subr.mxu0 0.0
    %134 = vmatpush1.xpose.msra.mxu0 %v92
    %135 = vmatprep.subr.mxu0 0.0
    %136 = vmatpush2.xpose.msra.mxu0 0.0
    %137 = vmatprep.subr.mxu0 0.0
    %138 = vmatpush2.xpose.msra.mxu0 0.0
    %139 = vmatprep.subr.mxu0 0.0
    %140 = vmatpush2.xpose.msra.mxu0 0.0
    %141 = vmatprep.subr.mxu0 0.0
    %142 = vmatpush2.xpose.msra.mxu0 0.0
    %143 = vmatprep.subr.mxu0 0.0
    %144 = vmatpush2.xpose.msra.mxu0 0.0
    %145 = vmatprep.subr.mxu0 0.0
    %146 = vmatpush2.xpose.msra.mxu0 0.0
    %147 = vmatprep.subr.mxu0 0.0
    %148 = vmatpush2.xpose.msra.mxu0 0.0
    %149 = vmatprep.subr.mxu0 0.0
    %150 = vmatpush2.xpose.msra.mxu0 0.0
    %151 = vmatprep.subr.mxu0 0.0
    %152 = vmatpush2.xpose.msra.mxu0 0.0
    %153 = vmatprep.subr.mxu0 0.0
    %154 = vmatpush2.xpose.msra.mxu0 0.0
    %155 = vmatprep.subr.mxu0 0.0
    %156 = vmatpush2.xpose.msra.mxu0 0.0
    %157 = vmatprep.subr.mxu0 0.0
    %158 = vmatpush2.xpose.msra.mxu0 0.0
    %159 = vmatprep.subr.mxu0 0.0
    %160 = vmatpush2.xpose.msra.mxu0 0.0
    %161 = vmatprep.subr.mxu0 0.0
    %162 = vmatpush2.xpose.msra.mxu0 0.0
    %163 = vmatprep.subr.mxu0 0.0
    %164 = vmatpush2.xpose.msra.mxu0 0.0
    %165 = vmatprep.subr.mxu0 0.0
    %166 = vmatpush2.xpose.msra.mxu0 0.0
    %167 = vmatprep.mubr.f32.mxu0 0.0
    %168 = vmatmul.mubr.f32.gmra.mxu0 %v89
    %v169 = vpop.f32.mrf.mxu0
    %v170 = vadd.f32 0.0, %v169
    %v171 = vpop.f32.mrf.mxu0
    %172 = vdwg.mxu0
    %v174 = vsel %vm87, %v76, 0
    %v177 = vsel %vm87, %v78, 0
    %v180 = vsel %vm87, %v79, 0
    %v183 = vsel %vm87, %v80, 0
    %v186 = vsel %vm87, %v81, 0
    %188 = vmatprep.subr.mxu0 0.0
    %189 = vmatpush1.xpose.msra.mxu0 0.0
    %190 = vmatprep.subr.mxu0 0.0
    %191 = vmatpush1.xpose.msra.mxu0 0.0
    %192 = vmatprep.subr.mxu0 0.0
    %193 = vmatpush1.xpose.msra.mxu0 0.0
    %194 = vmatprep.subr.mxu0 0.0
    %195 = vmatpush1.xpose.msra.mxu0 0.0
    %196 = vmatprep.subr.mxu0 0.0
    %197 = vmatpush1.xpose.msra.mxu0 0.0
    %198 = vmatprep.subr.mxu0 0.0
    %199 = vmatpush1.xpose.msra.mxu0 0.0
    %200 = vmatprep.subr.mxu0 0.0
    %201 = vmatpush1.xpose.msra.mxu0 0.0
    %202 = vmatprep.subr.mxu0 0.0
    %203 = vmatpush1.xpose.msra.mxu0 0.0
    %204 = vmatprep.subr.mxu0 0.0
    %205 = vmatpush1.xpose.msra.mxu0 0.0
    %206 = vmatprep.subr.mxu0 0.0
    %207 = vmatpush1.xpose.msra.mxu0 0.0
    %208 = vmatprep.subr.mxu0 0.0
    %209 = vmatpush1.xpose.msra.mxu0 0.0
    %210 = vmatprep.subr.mxu0 0.0
    %211 = vmatpush1.xpose.msra.mxu0 0.0
    %212 = vmatprep.subr.mxu0 0.0
    %213 = vmatpush1.xpose.msra.mxu0 %v186
    %214 = vmatprep.subr.mxu0 0.0
    %215 = vmatpush1.xpose.msra.mxu0 %v183
    %216 = vmatprep.subr.mxu0 0.0
    %217 = vmatpush1.xpose.msra.mxu0 %v180
    %218 = vmatprep.subr.mxu0 0.0
    %219 = vmatpush1.xpose.msra.mxu0 %v177
    %220 = vmatprep.subr.mxu0 0.0
    %221 = vmatpush2.xpose.msra.mxu0 0.0
    %222 = vmatprep.subr.mxu0 0.0
    %223 = vmatpush2.xpose.msra.mxu0 0.0
    %224 = vmatprep.subr.mxu0 0.0
    %225 = vmatpush2.xpose.msra.mxu0 0.0
    %226 = vmatprep.subr.mxu0 0.0
    %227 = vmatpush2.xpose.msra.mxu0 0.0
    %228 = vmatprep.subr.mxu0 0.0
    %229 = vmatpush2.xpose.msra.mxu0 0.0
    %230 = vmatprep.subr.mxu0 0.0
    %231 = vmatpush2.xpose.msra.mxu0 0.0
    %232 = vmatprep.subr.mxu0 0.0
    %233 = vmatpush2.xpose.msra.mxu0 0.0
    %234 = vmatprep.subr.mxu0 0.0
    %235 = vmatpush2.xpose.msra.mxu0 0.0
    %236 = vmatprep.subr.mxu0 0.0
    %237 = vmatpush2.xpose.msra.mxu0 0.0
    %238 = vmatprep.subr.mxu0 0.0
    %239 = vmatpush2.xpose.msra.mxu0 0.0
    %240 = vmatprep.subr.mxu0 0.0
    %241 = vmatpush2.xpose.msra.mxu0 0.0
    %242 = vmatprep.subr.mxu0 0.0
    %243 = vmatpush2.xpose.msra.mxu0 0.0
    %244 = vmatprep.subr.mxu0 0.0
    %245 = vmatpush2.xpose.msra.mxu0 0.0
    %246 = vmatprep.subr.mxu0 0.0
    %247 = vmatpush2.xpose.msra.mxu0 0.0
    %248 = vmatprep.subr.mxu0 0.0
    %249 = vmatpush2.xpose.msra.mxu0 0.0
    %250 = vmatprep.subr.mxu0 0.0
    %251 = vmatpush2.xpose.msra.mxu0 0.0
    %252 = vmatprep.mubr.f32.mxu0 0.0
    %253 = vmatmul.mubr.f32.gmra.mxu0 %v174
    %v254 = vpop.f32.mrf.mxu0
    %v255 = vadd.f32 %v170, %v254
    %v256 = vpop.f32.mrf.mxu0
    %257 = vdwg.mxu0
    %v259 = vlaneseq
    %v260 = vshrl.u32 %v259, 7
    %v261 = vsub.s32 0, %v260
    %v262 = vrot.slane %v86, %v261
    %v264 = vadd.f32 %v255, %v262
    %v265 = vxor.u32 %v264, 2147483648
    %v266 = vmul.f32 %v265, 1.442695
    %v267 = vpow.pop %v266
    %v268 = vadd.f32 %v267, 1.0
    %v269 = vrcp.pop %v268
    %v270 = vmul.f32 1.0, %v269
    %v271 = vsub.f32 %v77, %v76
    %v272 = vmul.f32 %v270, %v271
    %v273 = vadd.f32 %v76, %v272
    %274 = vst.msk [vmem:[#allocation10] sm:$0xff] %vm87, %v273
    // Predicated region
    $region38: #{tpu_custom_call.1} parent=1 // pred_check
      _
    $region39: #{tpu_custom_call.1} parent=1 // pred_check_branch
      %276 = sbr.rel (0) target = $region41
    $region40: #{tpu_custom_call.1} parent=1 // pred_region
      %s278 = ssub.s32 128, 32
      %279 = vsyncadd [#allocation4], %s278
      %s280 = sshll.u32 [#allocation10], 4
      %s281 = int_to_ptr.vmem [resolvable:$true] %s280
      %286 = dma.vmem_to_hbm [thread:$0]  %s281, 32, %s5, [#allocation4], 32, 32, 2
    $region41: #{tpu_custom_call.1} parent=1 // pred_fallthru
      _
    // Predicated region
    $region42: #{tpu_custom_call.1} parent=1 // pred_check
      _
    $region43: #{tpu_custom_call.1} parent=1 // pred_check_branch
      %288 = sbr.rel (0) target = $region45
    $region44: #{tpu_custom_call.1} parent=1 // pred_region
      %289 = dma.done [#allocation4], 128
    $region45: #{tpu_custom_call.1} parent=1 // pred_fallthru
      _
    %290 = vsyncpa [#allocation3], 1
    %291 = vsyncpa [#allocation6], 1
    %292 = vsyncpa [#allocation9], 1
    %293 = vsyncpa [#allocation4], 1

</llo_original>
